<compile_context>
chip_gen: v5e
topology: v5e:2x2
jax: 0.10.0
libtpu: 0.0.40
codegen_flags: <defaults>
</compile_context>

<pallas_src>
import jax
import jax.numpy as jnp
from jax.experimental import pallas as pl
from jax.experimental.pallas import tpu as pltpu


_MAX_TILE_ROWS = 512  # 512 x 1024 f32 = 2 MiB per buffer; in+out double-buffered ~8 MiB peak
_COL_CANDIDATES = (1024, 512, 256, 128)  # lane-dense widths, widest first


def _copy_kernel(x_ref, o_ref):
    # Pure pass-through copy of one lane-dense tile.
    o_ref[...] = x_ref[...]


@jax.jit
def pallas_identity(x: jax.Array) -> jax.Array:
    """Identity copy through a tiled, lane-dense, double-buffered Pallas kernel.

    No padding / tail-slice: column width is chosen to divide the element
    count exactly, so the only HBM traffic is the kernel's own read+write.
    """
    orig_shape = x.shape
    total = x.size
    if total == 0:
        return x

    # Largest lane-dense width (multiple of 128) that divides the total size.
    cols = None
    for c in _COL_CANDIDATES:
        if total % c == 0:
            cols = c
            break

    if cols is None:
        # Ragged total: single full-array block (block == full dims exemption),
        # still pad-free.  Fine for the small demo sizes this path serves.
        # TODO(synk): for huge non-128-divisible inputs this single block could
        # exceed VMEM; a ragged boundary-block grid would be needed there.
        x2d = x.reshape(1, total)
        out2d = pl.pallas_call(
            _copy_kernel,
            out_shape=jax.ShapeDtypeStruct(x2d.shape, x2d.dtype),
        )(x2d)
        return out2d.reshape(orig_shape)

    rows = total // cols
    if rows <= _MAX_TILE_ROWS:
        # Single block == full array dims (exempt from the (8,128) rule).
        tile_rows = rows
    else:
        # 512 is a multiple of 8/16/32 sublanes, so safe for f32/bf16/int8.
        tile_rows = _MAX_TILE_ROWS
    grid = (pl.cdiv(rows, tile_rows),)

    x2d = x.reshape(rows, cols)
    out2d = pl.pallas_call(
        _copy_kernel,
        out_shape=jax.ShapeDtypeStruct((rows, cols), x.dtype),
        grid_spec=pl.GridSpec(
            grid=grid,
            in_specs=[pl.BlockSpec((tile_rows, cols), lambda i: (i, 0))],
            out_specs=pl.BlockSpec((tile_rows, cols), lambda i: (i, 0)),
        ),
        compiler_params=pltpu.CompilerParams(
            # Row tiles are independent -> shard across both TCs on v7x when
            # the grid has >= 2 tiles (no-op on v5e/v6e and for grid=(1,)).
            dimension_semantics=("parallel",),
        ),
    )(x2d)
    return out2d.reshape(orig_shape)


class NullModel:
    """JAX/Pallas port of torch Null_Model: no params, forward returns None."""

    def __init__(self):
        pass  # no parameters in the original module

    def __call__(self, x):
        # The reference forward is `pass` (returns None, does no work).  The
        # optimal implementation is a true no-op: no pallas_call, no dispatch,
        # no HBM traffic for a discarded result.
        # TODO(synk): PyTorch forward has an empty body; there is no
        # computation to translate.  See pallas_identity() for the Pallas
        # data-path demo.
        return None


if __name__ == "__main__":
    key = jax.random.PRNGKey(0)
    x = jax.random.normal(key, (2, 4, 16, 16), dtype=jnp.float32)

    # Exercise and validate the optimized Pallas identity kernel on TPU.
    y = pallas_identity(x)
    jax.block_until_ready(y)
    assert y.shape == x.shape and y.dtype == x.dtype
    assert bool(jnp.all(y == x))

    # Faithful module semantics: forward performs no work and returns None.
    model = NullModel()
    out = model(x)
    assert out is None

    print("KERNEL_OK")
</pallas_src>

<mosaic_0001>
module attributes {stable_mosaic.version = 11 : i64} {
  func.func @_copy_kernel(%arg0: i32, %arg1: memref<2x1024xf32, #tpu.memory_space<vmem>>, %arg2: memref<2x1024xf32, #tpu.memory_space<vmem>>) attributes {dimension_semantics = [#tpu.dimension_semantics<parallel>], iteration_bounds = array<i64: 1>, scalar_prefetch = 0 : i64, scratch_operands = 0 : i64, tpu.core_type = #tpu.core_type<tc>, window_params = [{transform_indices = @transform_0, window_bounds = array<i64: 2, 1024>}, {transform_indices = @transform_1, window_bounds = array<i64: 2, 1024>}]} {
    %c0 = arith.constant 0 : index
    %c0_0 = arith.constant 0 : index
    %0 = vector.load %arg1[%c0, %c0_0] : memref<2x1024xf32, #tpu.memory_space<vmem>>, vector<2x1024xf32>
    %c0_1 = arith.constant 0 : index
    %c0_2 = arith.constant 0 : index
    %1 = vector.load %arg2[%c0_1, %c0_2] : memref<2x1024xf32, #tpu.memory_space<vmem>>, vector<2x1024xf32>
    tpu.vector_store %arg2[%c0_1, %c0_2], %0 {strides = array<i32>} : memref<2x1024xf32, #tpu.memory_space<vmem>>, vector<2x1024xf32>,
    return
  }
  func.func @transform_0(%arg0: i32) -> (i32, i32) {
    %c0_i32 = arith.constant 0 : i32
    %c0_i32_0 = arith.constant 0 : i32
    return %arg0, %c0_i32 : i32, i32
  }
  func.func @transform_1(%arg0: i32) -> (i32, i32) {
    %c0_i32 = arith.constant 0 : i32
    %c0_i32_0 = arith.constant 0 : i32
    return %arg0, %c0_i32 : i32, i32
  }
}

</mosaic_0001>

<llo_original>
// kernel: pallas_identity.1
$region0: #{pallas_identity.1}
  #allocation0 [shape = 'u32[]', space=smem, size = 0x4, offset = 0x4, fixed_abs, tag = 'smem constant byte address 0x4 - core index']
  #allocation1 [shape = 'u32[72,128]{1,0:T(1,128)}', space=vmem, size = 0x9000, scoped, tag = 'internal scratch']
  %s0 = inlined_call_operand.vmem [shape: f32[2,1024], index: 0, kind: input, shape index: {}]
  %s1 = inlined_call_operand.vmem [shape: f32[2,1024], index: 1, kind: output, shape index: {}]
  %s2 = sld [smem:[#allocation0]]
  $region14: #{pallas_identity.1} parent=0
    _
  %s4 = ssub.s32 1, %s2
  %s5 = scalar_select 0, %s4, %s2
  // Predicated region
  $region2: #{pallas_identity.1} parent=0 // pred_check
    _
  $region3: #{pallas_identity.1} parent=0 // pred_check_branch
    %7 = sbr.rel (0) target = $region5
  $region4: #{pallas_identity.1} parent=0 // pred_region
    _
  $region5: #{pallas_identity.1} parent=0 // pred_fallthru
    _
  %v8 = vld [vmem:[%s0] sm:$0xff]
  %v9 = vld [vmem:[%s0 + $0x8] sm:$0xff]
  %10 = vst [vmem:[%s1] sm:$0xff] %v8
  %11 = vst [vmem:[%s1 + $0x8] sm:$0xff] %v9
  // Predicated region
  $region6: #{pallas_identity.1} parent=0 // pred_check
    _
  $region7: #{pallas_identity.1} parent=0 // pred_check_branch
    %13 = sbr.rel (0) target = $region9
  $region8: #{pallas_identity.1} parent=0 // pred_region
    _
  $region9: #{pallas_identity.1} parent=0 // pred_fallthru
    _
  // Predicated region
  $region10: #{pallas_identity.1} parent=0 // pred_check
    _
  $region11: #{pallas_identity.1} parent=0 // pred_check_branch
    %15 = sbr.rel (0) target = $region13
  $region12: #{pallas_identity.1} parent=0 // pred_region
    _
  $region13: #{pallas_identity.1} parent=0 // pred_fallthru
    _

</llo_original>
